<compile_context>
chip_gen: v7x
topology: tpu7x:2x2x1
jax: 0.10.0
libtpu: 0.0.40
codegen_flags: <defaults>
</compile_context>

<pallas_src>
import functools

import jax
import jax.numpy as jnp
from jax.experimental import pallas as pl
from jax.experimental.pallas import tpu as pltpu


def _round_up(x: int, m: int) -> int:
    return ((x + m - 1) // m) * m


def _linear_relu_kernel(x_ref, w_ref, b_ref, o_ref):
    """One (batch, out-feature) tile: o = relu(x @ W + b), f32 accumulate."""
    x = x_ref[...]
    if x.dtype != w_ref.dtype:
        # Feed the MXU in the (possibly lower-precision) weight dtype.
        x = x.astype(w_ref.dtype)
    acc = jnp.dot(x, w_ref[...], preferred_element_type=jnp.float32)
    acc = jnp.maximum(acc + b_ref[...], 0.0)  # bias + ReLU in f32 on the VPU
    o_ref[...] = acc.astype(o_ref.dtype)


@functools.partial(
    jax.jit, static_argnames=("compute_dtype", "max_tile_b", "max_tile_n")
)
def nonlinear_for_flat(
    x, w, b, *, compute_dtype=jnp.float32, max_tile_b=512, max_tile_n=1024
):
    """Fused Linear+ReLU (NonLinearForFlat.forward).

    x: (B, in_ch)  f32
    w: (out_ch, in_ch) f32   (PyTorch nn.Linear layout)
    b: (out_ch,)   f32
    returns (B, out_ch) f32
    """
    B, in_ch = x.shape
    out_ch, _ = w.shape

    # ---- lane/sublane-friendly padded shapes -------------------------------
    K_pad = _round_up(in_ch, 128)
    N_pad = _round_up(out_ch, 128)

    B8 = _round_up(B, 8)
    tile_b = min(max_tile_b, B8)              # multiple of 8 by construction
    B_pad = _round_up(B8, tile_b)
    n_b_tiles = B_pad // tile_b

    tile_n = min(_round_up(max_tile_n, 128), N_pad)
    # tile_n divides N_pad when N_pad <= max_tile_n; otherwise round N up.
    N_grid = _round_up(N_pad, tile_n)
    n_n_tiles = N_grid // tile_n

    # ---- wrapper-side weight prep (transpose + pad + cast, done once) ------
    w_t = jnp.pad(w.T, ((0, K_pad - in_ch), (0, N_grid - out_ch)))
    w_t = w_t.astype(compute_dtype)                               # (K_pad, N_grid)
    b_p = jnp.pad(b, (0, N_grid - out_ch)).reshape(1, N_grid).astype(jnp.float32)
    x_p = jnp.pad(x, ((0, B_pad - B), (0, K_pad - in_ch)))        # f32 activations

    # ---- VMEM budget / cost estimate ----------------------------------------
    w_bytes = jnp.dtype(compute_dtype).itemsize
    vmem_est = (
        2 * tile_b * K_pad * 4           # double-buffered x tiles (f32)
        + 2 * K_pad * tile_n * w_bytes   # (double-buffered) weight tiles
        + 2 * tile_b * tile_n * 4        # double-buffered out tiles (f32)
        + 2 * tile_n * 4                 # bias tiles
    )
    vmem_limit = int(min(max(2 * vmem_est, 32 * 1024 * 1024), 48 * 1024 * 1024))

    cost = pl.CostEstimate(
        flops=2 * B_pad * K_pad * N_grid,
        transcendentals=0,
        bytes_accessed=int(
            x_p.size * 4 + w_t.size * w_bytes + b_p.size * 4 + B_pad * N_grid * 4
        ),
    )

    out_padded = pl.pallas_call(
        _linear_relu_kernel,
        out_shape=jax.ShapeDtypeStruct((B_pad, N_grid), x.dtype),
        grid=(n_b_tiles, n_n_tiles),
        in_specs=[
            pl.BlockSpec((tile_b, K_pad), lambda i, j: (i, 0)),   # x streams over batch
            pl.BlockSpec((K_pad, tile_n), lambda i, j: (0, j)),   # W streams over out-feat
            pl.BlockSpec((1, tile_n), lambda i, j: (0, j)),       # bias follows W
        ],
        out_specs=pl.BlockSpec((tile_b, tile_n), lambda i, j: (i, j)),
        compiler_params=pltpu.CompilerParams(
            dimension_semantics=("parallel", "parallel"),
            vmem_limit_bytes=vmem_limit,
        ),
        cost_estimate=cost,
    )(x_p, w_t, b_p)

    return out_padded[:B, :out_ch]


def reference(x, w, b):
    return jnp.maximum(x @ w.T + b, 0.0)


if __name__ == "__main__":
    input_channels, output_channels = 16, 32
    batch = 8

    key = jax.random.PRNGKey(0)
    kx, kw, kb = jax.random.split(key, 3)

    bound = 1.0 / (input_channels ** 0.5)   # nn.Linear default init range
    x = jax.random.normal(kx, (batch, input_channels), jnp.float32)
    w = jax.random.uniform(kw, (output_channels, input_channels),
                           jnp.float32, -bound, bound)
    b = jax.random.uniform(kb, (output_channels,), jnp.float32, -bound, bound)

    ref = reference(x, w, b)

    # Default f32 MXU path: matches the PyTorch module's precision.
    out_f32 = jax.block_until_ready(nonlinear_for_flat(x, w, b))
    assert out_f32.shape == (batch, output_channels)
    assert jnp.allclose(out_f32, ref, atol=1e-5, rtol=1e-5), "f32 mismatch"

    # Optional bf16-operand / f32-accumulate path: loosened tolerance is the
    # expected precision change, not a bug.
    out_bf16 = jax.block_until_ready(
        nonlinear_for_flat(x, w, b, compute_dtype=jnp.bfloat16))
    assert out_bf16.shape == (batch, output_channels)
    assert jnp.allclose(out_bf16, ref, atol=5e-2, rtol=5e-2), "bf16 mismatch"

    print("KERNEL_OK")
</pallas_src>

<mosaic_0001>
module attributes {stable_mosaic.version = 11 : i64} {
  func.func @_linear_relu_kernel(%arg0: i32, %arg1: i32, %arg2: memref<8x128xf32, #tpu.memory_space<vmem>>, %arg3: memref<128x128xf32, #tpu.memory_space<vmem>>, %arg4: memref<1x128xf32, #tpu.memory_space<vmem>>, %arg5: memref<8x128xf32, #tpu.memory_space<vmem>>) attributes {dimension_semantics = [#tpu.dimension_semantics<parallel>, #tpu.dimension_semantics<parallel>], iteration_bounds = array<i64: 1, 1>, scalar_prefetch = 0 : i64, scratch_operands = 0 : i64, tpu.core_type = #tpu.core_type<tc>, window_params = [{transform_indices = @transform_0, window_bounds = array<i64: 8, 128>}, {transform_indices = @transform_1, window_bounds = array<i64: 128, 128>}, {transform_indices = @transform_2, window_bounds = array<i64: 1, 128>}, {transform_indices = @transform_3, window_bounds = array<i64: 8, 128>}]} {
    %c0 = arith.constant 0 : index
    %c0_0 = arith.constant 0 : index
    %0 = vector.load %arg2[%c0, %c0_0] : memref<8x128xf32, #tpu.memory_space<vmem>>, vector<8x128xf32>
    %c0_1 = arith.constant 0 : index
    %c0_2 = arith.constant 0 : index
    %1 = vector.load %arg3[%c0_1, %c0_2] : memref<128x128xf32, #tpu.memory_space<vmem>>, vector<128x128xf32>
    %cst = arith.constant dense<0.000000e+00> : vector<8x128xf32>
    %2 = tpu.matmul %0, %1, %cst {dimension_numbers = #tpu.dot_dimension_numbers<[1], [0], [0], [1], [0, 0, 1, 1], [], []>} : vector<8x128xf32>, vector<128x128xf32>, vector<8x128xf32> -> vector<8x128xf32>
    %c0_3 = arith.constant 0 : index
    %c0_4 = arith.constant 0 : index
    %3 = vector.load %arg4[%c0_3, %c0_4] : memref<1x128xf32, #tpu.memory_space<vmem>>, vector<1x128xf32>
    %4 = vector.broadcast %3 : vector<1x128xf32> to vector<8x128xf32>
    %5 = arith.addf %2, %4 : vector<8x128xf32>
    %cst_5 = arith.constant 0.000000e+00 : f32
    %6 = vector.broadcast %cst_5 : f32 to vector<8x128xf32>
    %7 = arith.maximumf %5, %6 : vector<8x128xf32>
    %c0_6 = arith.constant 0 : index
    %c0_7 = arith.constant 0 : index
    %8 = vector.load %arg5[%c0_6, %c0_7] : memref<8x128xf32, #tpu.memory_space<vmem>>, vector<8x128xf32>
    tpu.vector_store %arg5[%c0_6, %c0_7], %7 {strides = array<i32>} : memref<8x128xf32, #tpu.memory_space<vmem>>, vector<8x128xf32>,
    return
  }
  func.func @transform_0(%arg0: i32, %arg1: i32) -> (i32, i32) {
    %c0_i32 = arith.constant 0 : i32
    %c0_i32_0 = arith.constant 0 : i32
    return %arg0, %c0_i32 : i32, i32
  }
  func.func @transform_1(%arg0: i32, %arg1: i32) -> (i32, i32) {
    %c0_i32 = arith.constant 0 : i32
    %c0_i32_0 = arith.constant 0 : i32
    return %c0_i32, %arg1 : i32, i32
  }
  func.func @transform_2(%arg0: i32, %arg1: i32) -> (i32, i32) {
    %c0_i32 = arith.constant 0 : i32
    %c0_i32_0 = arith.constant 0 : i32
    return %c0_i32, %arg1 : i32, i32
  }
  func.func @transform_3(%arg0: i32, %arg1: i32) -> (i32, i32) {
    %c0_i32 = arith.constant 0 : i32
    return %arg0, %arg1 : i32, i32
  }
}

</mosaic_0001>

<llo_original>
// kernel: nonlinear_for_flat.1
$region0: #{nonlinear_for_flat.1}
  #allocation0 [shape = 'u32[]', space=smem, size = 0x4, offset = 0x4, fixed_abs, tag = 'smem constant byte address 0x4 - core index']
  #allocation1 [shape = 'u32[144,128]{1,0:T(1,128)}', space=vmem, size = 0x12000, scoped, tag = 'internal scratch']
  %s0 = inlined_call_operand.vmem [shape: f32[8,128], index: 0, kind: input, shape index: {}]
  %s1 = inlined_call_operand.vmem [shape: f32[128,128], index: 1, kind: input, shape index: {}]
  %s2 = inlined_call_operand.vmem [shape: f32[1,128], index: 2, kind: input, shape index: {}]
  %s3 = inlined_call_operand.hbm [shape: f32[8,128], index: 3, kind: output, shape index: {}]
  %s4 = sld [smem:[#allocation0]]
  $region22: #{nonlinear_for_flat.1} parent=0
    _
  %s6 = ssub.s32 1, %s4
  %s7 = scalar_select 0, %s6, %s4
  $region1: #{nonlinear_for_flat.1} parent=0
    #allocation2 [shape = 'u8[4096]{0}', space=vmem, size = 0x1000, scoped, tag = 'output window, operand 0, single buffered']
    #allocation3 [shape = 's32[1]{0}', space=sflag, size = 0x4, scoped, tag = 'scoped memory for nonlinear_for_flat.1']
    %8 = vsyncpa [#allocation3], 0
    // Predicated region
    $region2: #{nonlinear_for_flat.1} parent=1 // pred_check
      _
    $region3: #{nonlinear_for_flat.1} parent=1 // pred_check_branch
      %10 = sbr.rel (0) target = $region5
    $region4: #{nonlinear_for_flat.1} parent=1 // pred_region
      _
    $region5: #{nonlinear_for_flat.1} parent=1 // pred_fallthru
      _
    // Predicated region
    $region6: #{nonlinear_for_flat.1} parent=1 // pred_check
      _
    $region7: #{nonlinear_for_flat.1} parent=1 // pred_check_branch
      %12 = sbr.rel (0) target = $region9
    $region8: #{nonlinear_for_flat.1} parent=1 // pred_region
      _
    $region9: #{nonlinear_for_flat.1} parent=1 // pred_fallthru
      _
    // Predicated region
    $region10: #{nonlinear_for_flat.1} parent=1 // pred_check
      _
    $region11: #{nonlinear_for_flat.1} parent=1 // pred_check_branch
      %14 = sbr.rel (0) target = $region13
    $region12: #{nonlinear_for_flat.1} parent=1 // pred_region
      _
    $region13: #{nonlinear_for_flat.1} parent=1 // pred_fallthru
      _
    %v15 = vld [vmem:[%s0] sm:$0xff]
    %v16 = vld [vmem:[%s1] sm:$0xff]
    %v17 = vld [vmem:[%s1 + $0x8] sm:$0xff]
    %v18 = vld [vmem:[%s1 + $0x10] sm:$0xff]
    %v19 = vld [vmem:[%s1 + $0x18] sm:$0xff]
    %v20 = vld [vmem:[%s1 + $0x20] sm:$0xff]
    %v21 = vld [vmem:[%s1 + $0x28] sm:$0xff]
    %v22 = vld [vmem:[%s1 + $0x30] sm:$0xff]
    %v23 = vld [vmem:[%s1 + $0x38] sm:$0xff]
    %v24 = vld [vmem:[%s1 + $0x40] sm:$0xff]
    %v25 = vld [vmem:[%s1 + $0x48] sm:$0xff]
    %v26 = vld [vmem:[%s1 + $0x50] sm:$0xff]
    %v27 = vld [vmem:[%s1 + $0x58] sm:$0xff]
    %v28 = vld [vmem:[%s1 + $0x60] sm:$0xff]
    %v29 = vld [vmem:[%s1 + $0x68] sm:$0xff]
    %v30 = vld [vmem:[%s1 + $0x70] sm:$0xff]
    %v31 = vld [vmem:[%s1 + $0x78] sm:$0xff]
    %v32 = vld [vmem:[%s2] sm:$0x1]
    %v34 = vlaneseq
    %v35 = vshrl.u32 %v34, 7
    %v36 = vsub.s32 0, %v35
    %v37 = vrot.slane %v32, %v36
    %39 = vmatprep.subr.mxu0 0.0
    %40 = vmatpush1.msra.mxu0 %v16
    %41 = vmatprep.subr.mxu0 0.0
    %42 = vmatpush1.msra.mxu0 %v17
    %43 = vmatprep.subr.mxu0 0.0
    %44 = vmatpush1.msra.mxu0 %v18
    %45 = vmatprep.subr.mxu0 0.0
    %46 = vmatpush1.msra.mxu0 %v19
    %47 = vmatprep.subr.mxu0 0.0
    %48 = vmatpush1.msra.mxu0 %v20
    %49 = vmatprep.subr.mxu0 0.0
    %50 = vmatpush1.msra.mxu0 %v21
    %51 = vmatprep.subr.mxu0 0.0
    %52 = vmatpush1.msra.mxu0 %v22
    %53 = vmatprep.subr.mxu0 0.0
    %54 = vmatpush1.msra.mxu0 %v23
    %55 = vmatprep.subr.mxu0 0.0
    %56 = vmatpush1.msra.mxu0 %v24
    %57 = vmatprep.subr.mxu0 0.0
    %58 = vmatpush1.msra.mxu0 %v25
    %59 = vmatprep.subr.mxu0 0.0
    %60 = vmatpush1.msra.mxu0 %v26
    %61 = vmatprep.subr.mxu0 0.0
    %62 = vmatpush1.msra.mxu0 %v27
    %63 = vmatprep.subr.mxu0 0.0
    %64 = vmatpush1.msra.mxu0 %v28
    %65 = vmatprep.subr.mxu0 0.0
    %66 = vmatpush1.msra.mxu0 %v29
    %67 = vmatprep.subr.mxu0 0.0
    %68 = vmatpush1.msra.mxu0 %v30
    %69 = vmatprep.subr.mxu0 0.0
    %70 = vmatpush1.msra.mxu0 %v31
    %71 = vmatprep.subr.mxu0 0.0
    %72 = vmatpush1.msra.mxu0 0.0
    %73 = vmatprep.subr.mxu0 0.0
    %74 = vmatpush1.msra.mxu0 0.0
    %75 = vmatprep.subr.mxu0 0.0
    %76 = vmatpush1.msra.mxu0 0.0
    %77 = vmatprep.subr.mxu0 0.0
    %78 = vmatpush1.msra.mxu0 0.0
    %79 = vmatprep.subr.mxu0 0.0
    %80 = vmatpush1.msra.mxu0 0.0
    %81 = vmatprep.subr.mxu0 0.0
    %82 = vmatpush1.msra.mxu0 0.0
    %83 = vmatprep.subr.mxu0 0.0
    %84 = vmatpush1.msra.mxu0 0.0
    %85 = vmatprep.subr.mxu0 0.0
    %86 = vmatpush1.msra.mxu0 0.0
    %87 = vmatprep.subr.mxu0 0.0
    %88 = vmatpush1.msra.mxu0 0.0
    %89 = vmatprep.subr.mxu0 0.0
    %90 = vmatpush1.msra.mxu0 0.0
    %91 = vmatprep.subr.mxu0 0.0
    %92 = vmatpush1.msra.mxu0 0.0
    %93 = vmatprep.subr.mxu0 0.0
    %94 = vmatpush1.msra.mxu0 0.0
    %95 = vmatprep.subr.mxu0 0.0
    %96 = vmatpush1.msra.mxu0 0.0
    %97 = vmatprep.subr.mxu0 0.0
    %98 = vmatpush1.msra.mxu0 0.0
    %99 = vmatprep.subr.mxu0 0.0
    %100 = vmatpush1.msra.mxu0 0.0
    %101 = vmatprep.subr.mxu0 0.0
    %102 = vmatpush1.msra.mxu0 0.0
    %103 = vmatprep.mubr.f32.mxu0 0.0
    %104 = vmatmul.mubr.f32.gmra.mrb[0].mxu0 %v15
    %v105 = vpop.f32.mrb[0].mxu0
    %v106 = vadd.f32 %v37, %v105
    %v107 = vpop.f32.mrb[0].mxu0
    %108 = vdwg.mxu0
    %v109 = vmax.f32 %v106, 0.0
    %110 = vst [vmem:[#allocation2] sm:$0xff] %v109
    // Predicated region
    $region14: #{nonlinear_for_flat.1} parent=1 // pred_check
      _
    $region15: #{nonlinear_for_flat.1} parent=1 // pred_check_branch
      %112 = sbr.rel (0) target = $region17
    $region16: #{nonlinear_for_flat.1} parent=1 // pred_region
      %s114 = ssub.s32 128, 128
      %115 = vsyncadd [#allocation3], %s114
      %s117 = sshll.u32 [#allocation2], 4
      %s118 = int_to_ptr.vmem [resolvable:$true] %s117
      %120 = dma.vmem_to_hbm [thread:$0]  %s118, 128, %s3, [#allocation3]
    $region17: #{nonlinear_for_flat.1} parent=1 // pred_fallthru
      _
    // Predicated region
    $region18: #{nonlinear_for_flat.1} parent=1 // pred_check
      _
    $region19: #{nonlinear_for_flat.1} parent=1 // pred_check_branch
      %122 = sbr.rel (0) target = $region21
    $region20: #{nonlinear_for_flat.1} parent=1 // pred_region
      %123 = dma.done [#allocation3], 128
    $region21: #{nonlinear_for_flat.1} parent=1 // pred_fallthru
      _
    %124 = vsyncpa [#allocation3], 1

</llo_original>
